<compile_context>
chip_gen: v5e
topology: v5e:2x2
jax: 0.10.0
libtpu: 0.0.40
codegen_flags: <defaults>
</compile_context>

<pallas_src>
import numpy as np

import jax
import jax.numpy as jnp
from jax.experimental import pallas as pl
from jax.experimental.pallas import tpu as pltpu

LANE = 128   # vreg lane width (last dim)


def _round_up(n, m):
    return ((n + m - 1) // m) * m


def _round_down(n, m):
    return (n // m) * m


def simple_nn_kernel(x_ref, w1_ref, b1_ref, w2_ref, b2_ref, o_ref):
    # fc1 + ReLU.  MXU accumulates in f32 regardless of the input dtype;
    # bias add / ReLU stay in f32 on the accumulator (v5e VPU has no bf16).
    h = jnp.dot(x_ref[...], w1_ref[...], preferred_element_type=jnp.float32)
    h = jnp.maximum(h + b1_ref[...], 0.0)
    # fc2 + Sigmoid.  Every output lane is a real output -> no wasted EUP work.
    y = jnp.dot(h.astype(w2_ref.dtype), w2_ref[...],
                preferred_element_type=jnp.float32)
    o_ref[...] = jax.nn.sigmoid(y + b2_ref[...]).astype(o_ref.dtype)


def simple_nn_forward(x, w1, b1, w2, b2, *, block_b=4096, compute_dtype=None,
                      pack=None):
    """Forward pass of SimpleNN.

    x:  (B, input_size)
    w1: (input_size, hidden_size)    b1: (hidden_size,)
    w2: (hidden_size, output_size)   b2: (output_size,)
    compute_dtype: optional narrower dtype (e.g. jnp.bfloat16) for x/w1/w2.
    """
    out_dtype = x.dtype
    B, K = x.shape
    H = w1.shape[1]
    N = w2.shape[1]

    cdtype = np.dtype(compute_dtype) if compute_dtype is not None else np.dtype(x.dtype)
    sub = 8 * (4 // cdtype.itemsize)          # sublane quantum for the compute dtype

    # Batch-packing factor: P logical rows share one 128-lane output row.
    if pack is None:
        p_try = LANE // N if (0 < N < LANE and LANE % N == 0) else 1
        # Block-diagonal weights grow as P^2 -- only pack while they stay small.
        pack = p_try > 1 and p_try * p_try * (K * H + H * N) * cdtype.itemsize <= (8 << 20)
    P = LANE // N if (pack and 0 < N < LANE and LANE % N == 0) else 1

    x_c = x.astype(cdtype)
    w1_c = w1.astype(cdtype)
    w2_c = w2.astype(cdtype)
    b1_2d = b1.reshape(1, H).astype(jnp.float32)
    b2_2d = b2.reshape(1, N).astype(jnp.float32)

    if P > 1:
        Bp = _round_up(B, P)
        if Bp != B:                            # only for odd batch sizes
            x_c = jnp.pad(x_c, ((0, Bp - B), (0, 0)))
        rows = Bp // P
        x_k = x_c.reshape(rows, P * K)         # free: contiguous row-major reshape
        eye = jnp.eye(P, dtype=cdtype)
        w1_k = jnp.kron(eye, w1_c)             # (P*K, P*H) block-diagonal
        w2_k = jnp.kron(eye, w2_c)             # (P*H, P*N), P*N == 128
        b1_k = jnp.tile(b1_2d, (1, P))
        b2_k = jnp.tile(b2_2d, (1, P))
    else:
        rows = B
        x_k, w1_k, w2_k, b1_k, b2_k = x_c, w1_c, w2_c, b1_2d, b2_2d
    Kk, Hk, Nk = x_k.shape[1], w1_k.shape[1], w2_k.shape[1]

    # Degenerate tiny batch: make sure there is at least one full sublane of rows.
    if rows < sub:
        x_k = jnp.pad(x_k, ((0, sub - rows), (0, 0)))
        rows = sub

    # Row tile: as large as requested (block_b batch rows), a sublane multiple,
    # never larger than the array (ragged last block handled by Pallas), and
    # split >= 2 ways when possible so both v7x TensorCores get work.
    if block_b < P * sub:
        block_b = P * sub
    want = max(sub, _round_down(block_b // P, sub))
    tile_rows = min(want, _round_down(rows, sub))
    if rows >= 2 * sub:
        tile_rows = min(tile_rows, _round_up(pl.cdiv(rows, 2), sub))
    grid = (pl.cdiv(rows, tile_rows),)

    cost = pl.CostEstimate(
        flops=2 * rows * (Kk * Hk + Hk * Nk),
        transcendentals=rows * Nk,
        bytes_accessed=(x_k.size * x_k.dtype.itemsize
                        + w1_k.size * w1_k.dtype.itemsize
                        + w2_k.size * w2_k.dtype.itemsize
                        + b1_k.size * 4 + b2_k.size * 4
                        + rows * Nk * np.dtype(out_dtype).itemsize),
    )

    out = pl.pallas_call(
        simple_nn_kernel,
        out_shape=jax.ShapeDtypeStruct((rows, Nk), out_dtype),
        grid=grid,
        in_specs=[
            pl.BlockSpec((tile_rows, Kk), lambda i: (i, 0)),  # x: streamed over batch
            pl.BlockSpec((Kk, Hk), lambda i: (0, 0)),         # weights / biases stay
            pl.BlockSpec((1, Hk), lambda i: (0, 0)),          #   VMEM-resident
            pl.BlockSpec((Hk, Nk), lambda i: (0, 0)),
            pl.BlockSpec((1, Nk), lambda i: (0, 0)),
        ],
        out_specs=pl.BlockSpec((tile_rows, Nk), lambda i: (i, 0)),
        compiler_params=pltpu.CompilerParams(
            dimension_semantics=("parallel",)),
        cost_estimate=cost,
    )(x_k, w1_k, b1_k, w2_k, b2_k)

    # Un-pack: contiguous reshape (free), slice only if the batch was padded.
    out = out.reshape(rows * P, N) if P > 1 else out
    if out.shape[0] != B:
        out = out[:B]
    return out


def _reference(x, w1, b1, w2, b2):
    return jax.nn.sigmoid(jnp.maximum(x @ w1 + b1, 0.0) @ w2 + b2)


if __name__ == "__main__":
    # Sizes implied by the module: input_size, hidden_size, output_size.
    batch = 8
    input_size = 32
    hidden_size = 64
    output_size = 16

    key = jax.random.PRNGKey(0)
    kx, kw1, kb1, kw2, kb2, kx2, kx3 = jax.random.split(key, 7)

    x = jax.random.normal(kx, (batch, input_size), dtype=jnp.float32)

    # Deterministic parameter init (uniform, PyTorch-Linear-style bound).
    bound1 = 1.0 / (input_size ** 0.5)
    w1 = jax.random.uniform(kw1, (input_size, hidden_size),
                            minval=-bound1, maxval=bound1, dtype=jnp.float32)
    b1 = jax.random.uniform(kb1, (hidden_size,),
                            minval=-bound1, maxval=bound1, dtype=jnp.float32)
    bound2 = 1.0 / (hidden_size ** 0.5)
    w2 = jax.random.uniform(kw2, (hidden_size, output_size),
                            minval=-bound2, maxval=bound2, dtype=jnp.float32)
    b2 = jax.random.uniform(kb2, (output_size,),
                            minval=-bound2, maxval=bound2, dtype=jnp.float32)

    # --- Small batch (packed path, single grid step) ---
    out = jax.block_until_ready(simple_nn_forward(x, w1, b1, w2, b2))
    ref = _reference(x, w1, b1, w2, b2)
    assert out.shape == (batch, output_size)
    assert jnp.allclose(out, ref, atol=1e-5, rtol=1e-5)

    # --- Large batch (packed path, default 4096-row tile, 2-way grid) ---
    big_batch = 1000
    xb = jax.random.normal(kx2, (big_batch, input_size), dtype=jnp.float32)
    out_b = jax.block_until_ready(simple_nn_forward(xb, w1, b1, w2, b2))
    ref_b = _reference(xb, w1, b1, w2, b2)
    assert out_b.shape == (big_batch, output_size)
    assert jnp.allclose(out_b, ref_b, atol=1e-5, rtol=1e-5)

    # --- Large batch, small tile (exercises multi-step pipeline + ragged block) ---
    out_s = jax.block_until_ready(
        simple_nn_forward(xb, w1, b1, w2, b2, block_b=128))
    assert jnp.allclose(out_s, ref_b, atol=1e-5, rtol=1e-5)

    # --- Unpacked fallback path (general output widths) ---
    xm = jax.random.normal(kx3, (24, input_size), dtype=jnp.float32)
    out_m = jax.block_until_ready(
        simple_nn_forward(xm, w1, b1, w2, b2, pack=False))
    ref_m = _reference(xm, w1, b1, w2, b2)
    assert out_m.shape == (24, output_size)
    assert jnp.allclose(out_m, ref_m, atol=1e-5, rtol=1e-5)

    # --- Optional bf16 inputs (halves x DMA); f32 accumulation and output ---
    out_bf = jax.block_until_ready(
        simple_nn_forward(xb, w1, b1, w2, b2, compute_dtype=jnp.bfloat16))
    assert out_bf.shape == (big_batch, output_size)
    assert jnp.allclose(out_bf, ref_b, atol=2e-2, rtol=2e-2)

    print("KERNEL_OK")
</pallas_src>

<mosaic_0001>
module attributes {stable_mosaic.version = 11 : i64} {
  func.func @simple_nn_kernel(%arg0: i32, %arg1: memref<8x256xf32, #tpu.memory_space<vmem>>, %arg2: memref<256x512xf32, #tpu.memory_space<vmem>>, %arg3: memref<1x512xf32, #tpu.memory_space<vmem>>, %arg4: memref<512x128xf32, #tpu.memory_space<vmem>>, %arg5: memref<1x128xf32, #tpu.memory_space<vmem>>, %arg6: memref<8x128xf32, #tpu.memory_space<vmem>>) attributes {dimension_semantics = [#tpu.dimension_semantics<parallel>], iteration_bounds = array<i64: 1>, scalar_prefetch = 0 : i64, scratch_operands = 0 : i64, tpu.core_type = #tpu.core_type<tc>, window_params = [{transform_indices = @transform_0, window_bounds = array<i64: 8, 256>}, {pipeline_mode = #tpu.pipeline_mode<synchronous>, transform_indices = @transform_1, window_bounds = array<i64: 256, 512>}, {pipeline_mode = #tpu.pipeline_mode<synchronous>, transform_indices = @transform_2, window_bounds = array<i64: 1, 512>}, {pipeline_mode = #tpu.pipeline_mode<synchronous>, transform_indices = @transform_3, window_bounds = array<i64: 512, 128>}, {pipeline_mode = #tpu.pipeline_mode<synchronous>, transform_indices = @transform_4, window_bounds = array<i64: 1, 128>}, {transform_indices = @transform_5, window_bounds = array<i64: 8, 128>}]} {
    %c0 = arith.constant 0 : index
    %c0_0 = arith.constant 0 : index
    %0 = vector.load %arg1[%c0, %c0_0] : memref<8x256xf32, #tpu.memory_space<vmem>>, vector<8x256xf32>
    %c0_1 = arith.constant 0 : index
    %c0_2 = arith.constant 0 : index
    %1 = vector.load %arg2[%c0_1, %c0_2] : memref<256x512xf32, #tpu.memory_space<vmem>>, vector<256x512xf32>
    %cst = arith.constant dense<0.000000e+00> : vector<8x512xf32>
    %2 = tpu.matmul %0, %1, %cst {dimension_numbers = #tpu.dot_dimension_numbers<[1], [0], [0], [1], [0, 0, 1, 1], [], []>} : vector<8x256xf32>, vector<256x512xf32>, vector<8x512xf32> -> vector<8x512xf32>
    %c0_3 = arith.constant 0 : index
    %c0_4 = arith.constant 0 : index
    %3 = vector.load %arg3[%c0_3, %c0_4] : memref<1x512xf32, #tpu.memory_space<vmem>>, vector<1x512xf32>
    %4 = vector.broadcast %3 : vector<1x512xf32> to vector<8x512xf32>
    %5 = arith.addf %2, %4 : vector<8x512xf32>
    %cst_5 = arith.constant 0.000000e+00 : f32
    %6 = vector.broadcast %cst_5 : f32 to vector<8x512xf32>
    %7 = arith.maximumf %5, %6 : vector<8x512xf32>
    %c0_6 = arith.constant 0 : index
    %c0_7 = arith.constant 0 : index
    %8 = vector.load %arg4[%c0_6, %c0_7] : memref<512x128xf32, #tpu.memory_space<vmem>>, vector<512x128xf32>
    %cst_8 = arith.constant dense<0.000000e+00> : vector<8x128xf32>
    %9 = tpu.matmul %7, %8, %cst_8 {dimension_numbers = #tpu.dot_dimension_numbers<[1], [0], [0], [1], [0, 0, 1, 1], [], []>} : vector<8x512xf32>, vector<512x128xf32>, vector<8x128xf32> -> vector<8x128xf32>
    %c0_9 = arith.constant 0 : index
    %c0_10 = arith.constant 0 : index
    %10 = vector.load %arg5[%c0_9, %c0_10] : memref<1x128xf32, #tpu.memory_space<vmem>>, vector<1x128xf32>
    %11 = vector.broadcast %10 : vector<1x128xf32> to vector<8x128xf32>
    %12 = arith.addf %9, %11 : vector<8x128xf32>
    %13 = arith.negf %12 : vector<8x128xf32>
    %14 = math.exp %13 : vector<8x128xf32>
    %cst_11 = arith.constant 1.000000e+00 : f32
    %15 = vector.broadcast %cst_11 : f32 to vector<8x128xf32>
    %16 = arith.addf %15, %14 : vector<8x128xf32>
    %17 = arith.divf %15, %16 : vector<8x128xf32>
    %c0_12 = arith.constant 0 : index
    %c0_13 = arith.constant 0 : index
    %18 = vector.load %arg6[%c0_12, %c0_13] : memref<8x128xf32, #tpu.memory_space<vmem>>, vector<8x128xf32>
    tpu.vector_store %arg6[%c0_12, %c0_13], %17 {strides = array<i32>} : memref<8x128xf32, #tpu.memory_space<vmem>>, vector<8x128xf32>,
    return
  }
  func.func @transform_0(%arg0: i32) -> (i32, i32) {
    %c0_i32 = arith.constant 0 : i32
    %c0_i32_0 = arith.constant 0 : i32
    return %arg0, %c0_i32 : i32, i32
  }
  func.func @transform_1(%arg0: i32) -> (i32, i32) {
    %c0_i32 = arith.constant 0 : i32
    %c0_i32_0 = arith.constant 0 : i32
    %c0_i32_1 = arith.constant 0 : i32
    return %c0_i32, %c0_i32_0 : i32, i32
  }
  func.func @transform_2(%arg0: i32) -> (i32, i32) {
    %c0_i32 = arith.constant 0 : i32
    %c0_i32_0 = arith.constant 0 : i32
    %c0_i32_1 = arith.constant 0 : i32
    return %c0_i32, %c0_i32_0 : i32, i32
  }
  func.func @transform_3(%arg0: i32) -> (i32, i32) {
    %c0_i32 = arith.constant 0 : i32
    %c0_i32_0 = arith.constant 0 : i32
    %c0_i32_1 = arith.constant 0 : i32
    return %c0_i32, %c0_i32_0 : i32, i32
  }
  func.func @transform_4(%arg0: i32) -> (i32, i32) {
    %c0_i32 = arith.constant 0 : i32
    %c0_i32_0 = arith.constant 0 : i32
    %c0_i32_1 = arith.constant 0 : i32
    return %c0_i32, %c0_i32_0 : i32, i32
  }
  func.func @transform_5(%arg0: i32) -> (i32, i32) {
    %c0_i32 = arith.constant 0 : i32
    %c0_i32_0 = arith.constant 0 : i32
    return %arg0, %c0_i32 : i32, i32
  }
}

</mosaic_0001>

<llo_original>
// kernel: tpu_custom_call.1
$region0: #{tpu_custom_call.1}
  #allocation0 [shape = 'u32[]', space=smem, size = 0x4, offset = 0x4, fixed_abs, tag = 'smem constant byte address 0x4 - core index']
  #allocation1 [shape = 'u32[72,128]{1,0:T(1,128)}', space=vmem, size = 0x9000, scoped, tag = 'internal scratch']
  %s0 = inlined_call_operand.hbm [shape: f32[8,256], index: 0, kind: input, shape index: {}]
  %s1 = inlined_call_operand.hbm [shape: f32[256,512], index: 1, kind: input, shape index: {}]
  %s2 = inlined_call_operand.hbm [shape: f32[1,512], index: 2, kind: input, shape index: {}]
  %s3 = inlined_call_operand.hbm [shape: f32[512,128], index: 3, kind: input, shape index: {}]
  %s4 = inlined_call_operand.vmem [shape: f32[1,128], index: 4, kind: input, shape index: {}]
  %s5 = inlined_call_operand.hbm [shape: f32[8,128], index: 5, kind: output, shape index: {}]
  %s6 = sld [smem:[#allocation0]]
  $region46: #{tpu_custom_call.1} parent=0
    _
  %s8 = ssub.s32 1, %s6
  %s9 = scalar_select 0, %s8, %s6
  $region1: #{tpu_custom_call.1} parent=0
    #allocation2 [shape = 'u8[8192]{0}', space=vmem, size = 0x2000, scoped, tag = 'input window, operand 0, single buffered']
    #allocation3 [shape = 's32[1]{0}', space=sflag, size = 0x4, scoped, tag = 'scoped memory for tpu_custom_call.1']
    #allocation4 [shape = 's32[1]{0}', space=sflag, size = 0x4, scoped, tag = 'scoped memory for tpu_custom_call.1']
    #allocation5 [shape = 'u8[524288]{0}', space=vmem, size = 0x80000, scoped, tag = 'input window, operand 1, single buffered']
    #allocation6 [shape = 's32[1]{0}', space=sflag, size = 0x4, scoped, tag = 'scoped memory for tpu_custom_call.1']
    #allocation7 [shape = 'u8[2048]{0}', space=vmem, size = 0x800, scoped, tag = 'input window, operand 2, single buffered']
    #allocation8 [shape = 'u8[262144]{0}', space=vmem, size = 0x40000, scoped, tag = 'input window, operand 3, single buffered']
    #allocation9 [shape = 's32[1]{0}', space=sflag, size = 0x4, scoped, tag = 'scoped memory for tpu_custom_call.1']
    #allocation10 [shape = 'u8[4096]{0}', space=vmem, size = 0x1000, scoped, tag = 'output window, operand 0, single buffered']
    %10 = vsyncpa [#allocation3], 0
    %11 = vsyncpa [#allocation6], 0
    %12 = vsyncpa [#allocation9], 0
    %13 = vsyncpa [#allocation4], 0
    // Predicated region
    $region2: #{tpu_custom_call.1} parent=1 // pred_check
      _
    $region3: #{tpu_custom_call.1} parent=1 // pred_check_branch
      %15 = sbr.rel (0) target = $region5
    $region4: #{tpu_custom_call.1} parent=1 // pred_region
      %17 = vsyncadd [#allocation3], 0
      %s19 = sshll.u32 %s0, 4
      %s20 = int_to_ptr.hbm [resolvable:$true] %s19
      %s21 = sshll.u32 [#allocation2], 4
      %s22 = int_to_ptr.vmem [resolvable:$true] %s21
      %24 = dma.hbm_to_vmem [thread:$0]  %s20, 256, %s22, [#allocation3]
    $region5: #{tpu_custom_call.1} parent=1 // pred_fallthru
      _
    // Predicated region
    $region6: #{tpu_custom_call.1} parent=1 // pred_check
      _
    $region7: #{tpu_custom_call.1} parent=1 // pred_check_branch
      %26 = sbr.rel (0) target = $region9
    $region8: #{tpu_custom_call.1} parent=1 // pred_region
      %28 = vsyncadd [#allocation6], 0
      %s29 = sshll.u32 %s1, 4
      %s30 = int_to_ptr.hbm [resolvable:$true] %s29
      %s31 = sshll.u32 [#allocation5], 4
      %s32 = int_to_ptr.vmem [resolvable:$true] %s31
      %37 = dma.hbm_to_vmem [thread:$0]  %s30, 16384, %s32, [#allocation6], 512, 512, 32
    $region9: #{tpu_custom_call.1} parent=1 // pred_fallthru
      _
    // Predicated region
    $region10: #{tpu_custom_call.1} parent=1 // pred_check
      _
    $region11: #{tpu_custom_call.1} parent=1 // pred_check_branch
      %39 = sbr.rel (0) target = $region13
    $region12: #{tpu_custom_call.1} parent=1 // pred_region
      %41 = vsyncadd [#allocation6], 0
      %s43 = sshll.u32 %s2, 4
      %s44 = int_to_ptr.hbm [resolvable:$true] %s43
      %s45 = sshll.u32 [#allocation7], 4
      %s46 = int_to_ptr.vmem [resolvable:$true] %s45
      %48 = dma.hbm_to_vmem [thread:$0]  %s44, 64, %s46, [#allocation6]
    $region13: #{tpu_custom_call.1} parent=1 // pred_fallthru
      _
    // Predicated region
    $region14: #{tpu_custom_call.1} parent=1 // pred_check
      _
    $region15: #{tpu_custom_call.1} parent=1 // pred_check_branch
      %50 = sbr.rel (0) target = $region17
    $region16: #{tpu_custom_call.1} parent=1 // pred_region
      %52 = vsyncadd [#allocation9], 0
      %s53 = sshll.u32 %s3, 4
      %s54 = int_to_ptr.hbm [resolvable:$true] %s53
      %s55 = sshll.u32 [#allocation8], 4
      %s56 = int_to_ptr.vmem [resolvable:$true] %s55
      %61 = dma.hbm_to_vmem [thread:$0]  %s54, 8192, %s56, [#allocation9], 128, 128, 8
    $region17: #{tpu_custom_call.1} parent=1 // pred_fallthru
      _
    // Predicated region
    $region18: #{tpu_custom_call.1} parent=1 // pred_check
      _
    $region19: #{tpu_custom_call.1} parent=1 // pred_check_branch
      %63 = sbr.rel (0) target = $region21
    $region20: #{tpu_custom_call.1} parent=1 // pred_region
      _
    $region21: #{tpu_custom_call.1} parent=1 // pred_fallthru
      _
    // Predicated region
    $region22: #{tpu_custom_call.1} parent=1 // pred_check
      _
    $region23: #{tpu_custom_call.1} parent=1 // pred_check_branch
      %65 = sbr.rel (0) target = $region25
    $region24: #{tpu_custom_call.1} parent=1 // pred_region
      %67 = dma.done [#allocation3], 256
    $region25: #{tpu_custom_call.1} parent=1 // pred_fallthru
      _
    // Predicated region
    $region26: #{tpu_custom_call.1} parent=1 // pred_check
      _
    $region27: #{tpu_custom_call.1} parent=1 // pred_check_branch
      %69 = sbr.rel (0) target = $region29
    $region28: #{tpu_custom_call.1} parent=1 // pred_region
      %71 = dma.done [#allocation6], 16384
    $region29: #{tpu_custom_call.1} parent=1 // pred_fallthru
      _
    // Predicated region
    $region30: #{tpu_custom_call.1} parent=1 // pred_check
      _
    $region31: #{tpu_custom_call.1} parent=1 // pred_check_branch
      %73 = sbr.rel (0) target = $region33
    $region32: #{tpu_custom_call.1} parent=1 // pred_region
      %75 = dma.done [#allocation6], 64
    $region33: #{tpu_custom_call.1} parent=1 // pred_fallthru
      _
    // Predicated region
    $region34: #{tpu_custom_call.1} parent=1 // pred_check
      _
    $region35: #{tpu_custom_call.1} parent=1 // pred_check_branch
      %77 = sbr.rel (0) target = $region37
    $region36: #{tpu_custom_call.1} parent=1 // pred_region
      %79 = dma.done [#allocation9], 8192
    $region37: #{tpu_custom_call.1} parent=1 // pred_fallthru
      _
    %v80 = vld [vmem:[#allocation2] sm:$0xff]
    %v81 = vld [vmem:[#allocation2 + $0x8] sm:$0xff]
    %v82 = vld [vmem:[#allocation5] sm:$0xff]
    %v83 = vld [vmem:[#allocation5 + $0x8] sm:$0xff]
    %v84 = vld [vmem:[#allocation5 + $0x10] sm:$0xff]
    %v85 = vld [vmem:[#allocation5 + $0x18] sm:$0xff]
    %v86 = vld [vmem:[#allocation5 + $0x20] sm:$0xff]
    %v87 = vld [vmem:[#allocation5 + $0x28] sm:$0xff]
    %v88 = vld [vmem:[#allocation5 + $0x30] sm:$0xff]
    %v89 = vld [vmem:[#allocation5 + $0x38] sm:$0xff]
    %v90 = vld [vmem:[#allocation5 + $0x40] sm:$0xff]
    %v91 = vld [vmem:[#allocation5 + $0x48] sm:$0xff]
    %v92 = vld [vmem:[#allocation5 + $0x50] sm:$0xff]
    %v93 = vld [vmem:[#allocation5 + $0x58] sm:$0xff]
    %v94 = vld [vmem:[#allocation5 + $0x60] sm:$0xff]
    %v95 = vld [vmem:[#allocation5 + $0x68] sm:$0xff]
    %v96 = vld [vmem:[#allocation5 + $0x70] sm:$0xff]
    %v97 = vld [vmem:[#allocation5 + $0x78] sm:$0xff]
    %v98 = vld [vmem:[#allocation5 + $0x80] sm:$0xff]
    %v99 = vld [vmem:[#allocation5 + $0x88] sm:$0xff]
    %v100 = vld [vmem:[#allocation5 + $0x90] sm:$0xff]
    %v101 = vld [vmem:[#allocation5 + $0x98] sm:$0xff]
    %v102 = vld [vmem:[#allocation5 + $0xa0] sm:$0xff]
    %v103 = vld [vmem:[#allocation5 + $0xa8] sm:$0xff]
    %v104 = vld [vmem:[#allocation5 + $0xb0] sm:$0xff]
    %v105 = vld [vmem:[#allocation5 + $0xb8] sm:$0xff]
    %v106 = vld [vmem:[#allocation5 + $0xc0] sm:$0xff]
    %v107 = vld [vmem:[#allocation5 + $0xc8] sm:$0xff]
    %v108 = vld [vmem:[#allocation5 + $0xd0] sm:$0xff]
    %v109 = vld [vmem:[#allocation5 + $0xd8] sm:$0xff]
    %v110 = vld [vmem:[#allocation5 + $0xe0] sm:$0xff]
    %v111 = vld [vmem:[#allocation5 + $0xe8] sm:$0xff]
    %v112 = vld [vmem:[#allocation5 + $0xf0] sm:$0xff]
    %v113 = vld [vmem:[#allocation5 + $0xf8] sm:$0xff]
    %v114 = vld [vmem:[#allocation5 + $0x100] sm:$0xff]
    %v115 = vld [vmem:[#allocation5 + $0x108] sm:$0xff]
    %v116 = vld [vmem:[#allocation5 + $0x110] sm:$0xff]
    %v117 = vld [vmem:[#allocation5 + $0x118] sm:$0xff]
    %v118 = vld [vmem:[#allocation5 + $0x120] sm:$0xff]
    %v119 = vld [vmem:[#allocation5 + $0x128] sm:$0xff]
    %v120 = vld [vmem:[#allocation5 + $0x130] sm:$0xff]
    %v121 = vld [vmem:[#allocation5 + $0x138] sm:$0xff]
    %v122 = vld [vmem:[#allocation5 + $0x140] sm:$0xff]
    %v123 = vld [vmem:[#allocation5 + $0x148] sm:$0xff]
    %v124 = vld [vmem:[#allocation5 + $0x150] sm:$0xff]
    %v125 = vld [vmem:[#allocation5 + $0x158] sm:$0xff]
    %v126 = vld [vmem:[#allocation5 + $0x160] sm:$0xff]
    %v127 = vld [vmem:[#allocation5 + $0x168] sm:$0xff]
    %v128 = vld [vmem:[#allocation5 + $0x170] sm:$0xff]
    %v129 = vld [vmem:[#allocation5 + $0x178] sm:$0xff]
    %v130 = vld [vmem:[#allocation5 + $0x180] sm:$0xff]
    %v131 = vld [vmem:[#allocation5 + $0x188] sm:$0xff]
    %v132 = vld [vmem:[#allocation5 + $0x190] sm:$0xff]
    %v133 = vld [vmem:[#allocation5 + $0x198] sm:$0xff]
    %v134 = vld [vmem:[#allocation5 + $0x1a0] sm:$0xff]
    %v135 = vld [vmem:[#allocation5 + $0x1a8] sm:$0xff]
    %v136 = vld [vmem:[#allocation5 + $0x1b0] sm:$0xff]
    %v137 = vld [vmem:[#allocation5 + $0x1b8] sm:$0xff]
    %v138 = vld [vmem:[#allocation5 + $0x1c0] sm:$0xff]
    %v139 = vld [vmem:[#allocation5 + $0x1c8] sm:$0xff]
    %v140 = vld [vmem:[#allocation5 + $0x1d0] sm:$0xff]
    %v141 = vld [vmem:[#allocation5 + $0x1d8] sm:$0xff]
    %v142 = vld [vmem:[#allocation5 + $0x1e0] sm:$0xff]
    %v143 = vld [vmem:[#allocation5 + $0x1e8] sm:$0xff]
    %v144 = vld [vmem:[#allocation5 + $0x1f0] sm:$0xff]
    %v145 = vld [vmem:[#allocation5 + $0x1f8] sm:$0xff]
    %v146 = vld [vmem:[#allocation5 + $0x200] sm:$0xff]
    %v147 = vld [vmem:[#allocation5 + $0x208] sm:$0xff]
    %v148 = vld [vmem:[#allocation5 + $0x210] sm:$0xff]
    %v149 = vld [vmem:[#allocation5 + $0x218] sm:$0xff]
    %v150 = vld [vmem:[#allocation5 + $0x220] sm:$0xff]
    %v151 = vld [vmem:[#allocation5 + $0x228] sm:$0xff]
    %v152 = vld [vmem:[#allocation5 + $0x230] sm:$0xff]
    %v153 = vld [vmem:[#allocation5 + $0x238] sm:$0xff]
    %v154 = vld [vmem:[#allocation5 + $0x240] sm:$0xff]
    %v155 = vld [vmem:[#allocation5 + $0x248] sm:$0xff]
    %v156 = vld [vmem:[#allocation5 + $0x250] sm:$0xff]
    %v157 = vld [vmem:[#allocation5 + $0x258] sm:$0xff]
    %v158 = vld [vmem:[#allocation5 + $0x260] sm:$0xff]
    %v159 = vld [vmem:[#allocation5 + $0x268] sm:$0xff]
    %v160 = vld [vmem:[#allocation5 + $0x270] sm:$0xff]
    %v161 = vld [vmem:[#allocation5 + $0x278] sm:$0xff]
    %v162 = vld [vmem:[#allocation5 + $0x280] sm:$0xff]
    %v163 = vld [vmem:[#allocation5 + $0x288] sm:$0xff]
    %v164 = vld [vmem:[#allocation5 + $0x290] sm:$0xff]
    %v165 = vld [vmem:[#allocation5 + $0x298] sm:$0xff]
    %v166 = vld [vmem:[#allocation5 + $0x2a0] sm:$0xff]
    %v167 = vld [vmem:[#allocation5 + $0x2a8] sm:$0xff]
    %v168 = vld [vmem:[#allocation5 + $0x2b0] sm:$0xff]
    %v169 = vld [vmem:[#allocation5 + $0x2b8] sm:$0xff]
    %v170 = vld [vmem:[#allocation5 + $0x2c0] sm:$0xff]
    %v171 = vld [vmem:[#allocation5 + $0x2c8] sm:$0xff]
    %v172 = vld [vmem:[#allocation5 + $0x2d0] sm:$0xff]
    %v173 = vld [vmem:[#allocation5 + $0x2d8] sm:$0xff]
    %v174 = vld [vmem:[#allocation5 + $0x2e0] sm:$0xff]
    %v175 = vld [vmem:[#allocation5 + $0x2e8] sm:$0xff]
    %v176 = vld [vmem:[#allocation5 + $0x2f0] sm:$0xff]
    %v177 = vld [vmem:[#allocation5 + $0x2f8] sm:$0xff]
    %v178 = vld [vmem:[#allocation5 + $0x300] sm:$0xff]
    %v179 = vld [vmem:[#allocation5 + $0x308] sm:$0xff]
    %v180 = vld [vmem:[#allocation5 + $0x310] sm:$0xff]
    %v181 = vld [vmem:[#allocation5 + $0x318] sm:$0xff]
    %v182 = vld [vmem:[#allocation5 + $0x320] sm:$0xff]
    %v183 = vld [vmem:[#allocation5 + $0x328] sm:$0xff]
    %v184 = vld [vmem:[#allocation5 + $0x330] sm:$0xff]
    %v185 = vld [vmem:[#allocation5 + $0x338] sm:$0xff]
    %v186 = vld [vmem:[#allocation5 + $0x340] sm:$0xff]
    %v187 = vld [vmem:[#allocation5 + $0x348] sm:$0xff]
    %v188 = vld [vmem:[#allocation5 + $0x350] sm:$0xff]
    %v189 = vld [vmem:[#allocation5 + $0x358] sm:$0xff]
    %v190 = vld [vmem:[#allocation5 + $0x360] sm:$0xff]
    %v191 = vld [vmem:[#allocation5 + $0x368] sm:$0xff]
    %v192 = vld [vmem:[#allocation5 + $0x370] sm:$0xff]
    %v193 = vld [vmem:[#allocation5 + $0x378] sm:$0xff]
    %v194 = vld [vmem:[#allocation5 + $0x380] sm:$0xff]
    %v195 = vld [vmem:[#allocation5 + $0x388] sm:$0xff]
    %v196 = vld [vmem:[#allocation5 + $0x390] sm:$0xff]
    %v197 = vld [vmem:[#allocation5 + $0x398] sm:$0xff]
    %v198 = vld [vmem:[#allocation5 + $0x3a0] sm:$0xff]
    %v199 = vld [vmem:[#allocation5 + $0x3a8] sm:$0xff]
    %v200 = vld [vmem:[#allocation5 + $0x3b0] sm:$0xff]
    %v201 = vld [vmem:[#allocation5 + $0x3b8] sm:$0xff]
    %v202 = vld [vmem:[#allocation5 + $0x3c0] sm:$0xff]
    %v203 = vld [vmem:[#allocation5 + $0x3c8] sm:$0xff]
    %v204 = vld [vmem:[#allocation5 + $0x3d0] sm:$0xff]
    %v205 = vld [vmem:[#allocation5 + $0x3d8] sm:$0xff]
    %v206 = vld [vmem:[#allocation5 + $0x3e0] sm:$0xff]
    %v207 = vld [vmem:[#allocation5 + $0x3e8] sm:$0xff]
    %v208 = vld [vmem:[#allocation5 + $0x3f0] sm:$0xff]
    %v209 = vld [vmem:[#allocation5 + $0x3f8] sm:$0xff]
    %v210 = vld [vmem:[#allocation7] sm:$0xf]
    %v212 = vperm.slane %v210, 0
    %v213 = vperm.slane %v210, 1
    %v214 = vperm.slane %v210, 2
    %v215 = vperm.slane %v210, 3
    %220 = vmatpush.msra.mxu0 %v142
    %221 = vmatpush.msra.mxu0 %v138
    %222 = vmatpush.msra.mxu0 %v134
    %223 = vmatpush.msra.mxu0 %v130
    %224 = vmatpush.msra.mxu0 %v126
    %225 = vmatpush.msra.mxu0 %v122
    %226 = vmatpush.msra.mxu0 %v118
    %227 = vmatpush.msra.mxu0 %v114
    %228 = vmatpush.msra.mxu0 %v110
    %229 = vmatpush.msra.mxu0 %v106
    %230 = vmatpush.msra.mxu0 %v102
    %231 = vmatpush.msra.mxu0 %v98
    %232 = vmatpush.msra.mxu0 %v94
    %233 = vmatpush.msra.mxu0 %v90
    %234 = vmatpush.msra.mxu0 %v86
    %235 = vmatpush.msra.mxu0 %v82
    %236 = vmatmul.f32.gmra.mxu0 %v80
    %v237 = vpop.f32.mrf.mxu0
    %v238 = vadd.f32 %v212, %v237
    %239 = vdwg.mxu0
    %240 = vmatpush.msra.mxu0 %v206
    %241 = vmatpush.msra.mxu0 %v202
    %242 = vmatpush.msra.mxu0 %v198
    %243 = vmatpush.msra.mxu0 %v194
    %244 = vmatpush.msra.mxu0 %v190
    %245 = vmatpush.msra.mxu0 %v186
    %246 = vmatpush.msra.mxu0 %v182
    %247 = vmatpush.msra.mxu0 %v178
    %248 = vmatpush.msra.mxu0 %v174
    %249 = vmatpush.msra.mxu0 %v170
    %250 = vmatpush.msra.mxu0 %v166
    %251 = vmatpush.msra.mxu0 %v162
    %252 = vmatpush.msra.mxu0 %v158
    %253 = vmatpush.msra.mxu0 %v154
    %254 = vmatpush.msra.mxu0 %v150
    %255 = vmatpush.msra.mxu0 %v146
    %256 = vmatmul.f32.gmra.mxu0 %v81
    %v257 = vpop.f32.mrf.mxu0
    %v258 = vadd.f32 %v238, %v257
    %259 = vdwg.mxu0
    %260 = vmatpush.msra.mxu0 %v143
    %261 = vmatpush.msra.mxu0 %v139
    %262 = vmatpush.msra.mxu0 %v135
    %263 = vmatpush.msra.mxu0 %v131
    %264 = vmatpush.msra.mxu0 %v127
    %265 = vmatpush.msra.mxu0 %v123
    %266 = vmatpush.msra.mxu0 %v119
    %267 = vmatpush.msra.mxu0 %v115
    %268 = vmatpush.msra.mxu0 %v111
    %269 = vmatpush.msra.mxu0 %v107
    %270 = vmatpush.msra.mxu0 %v103
    %271 = vmatpush.msra.mxu0 %v99
    %272 = vmatpush.msra.mxu0 %v95
    %273 = vmatpush.msra.mxu0 %v91
    %274 = vmatpush.msra.mxu0 %v87
    %275 = vmatpush.msra.mxu0 %v83
    %276 = vmatmul.f32.gmra.mxu0 %v80
    %v277 = vpop.f32.mrf.mxu0
    %v278 = vadd.f32 %v213, %v277
    %279 = vdwg.mxu0
    %280 = vmatpush.msra.mxu0 %v207
    %281 = vmatpush.msra.mxu0 %v203
    %282 = vmatpush.msra.mxu0 %v199
    %283 = vmatpush.msra.mxu0 %v195
    %284 = vmatpush.msra.mxu0 %v191
    %285 = vmatpush.msra.mxu0 %v187
    %286 = vmatpush.msra.mxu0 %v183
    %287 = vmatpush.msra.mxu0 %v179
    %288 = vmatpush.msra.mxu0 %v175
    %289 = vmatpush.msra.mxu0 %v171
    %290 = vmatpush.msra.mxu0 %v167
    %291 = vmatpush.msra.mxu0 %v163
    %292 = vmatpush.msra.mxu0 %v159
    %293 = vmatpush.msra.mxu0 %v155
    %294 = vmatpush.msra.mxu0 %v151
    %295 = vmatpush.msra.mxu0 %v147
    %296 = vmatmul.f32.gmra.mxu0 %v81
    %v297 = vpop.f32.mrf.mxu0
    %v298 = vadd.f32 %v278, %v297
    %299 = vdwg.mxu0
    %300 = vmatpush.msra.mxu0 %v144
    %301 = vmatpush.msra.mxu0 %v140
    %302 = vmatpush.msra.mxu0 %v136
    %303 = vmatpush.msra.mxu0 %v132
    %304 = vmatpush.msra.mxu0 %v128
    %305 = vmatpush.msra.mxu0 %v124
    %306 = vmatpush.msra.mxu0 %v120
    %307 = vmatpush.msra.mxu0 %v116
    %308 = vmatpush.msra.mxu0 %v112
    %309 = vmatpush.msra.mxu0 %v108
    %310 = vmatpush.msra.mxu0 %v104
    %311 = vmatpush.msra.mxu0 %v100
    %312 = vmatpush.msra.mxu0 %v96
    %313 = vmatpush.msra.mxu0 %v92
    %314 = vmatpush.msra.mxu0 %v88
    %315 = vmatpush.msra.mxu0 %v84
    %316 = vmatmul.f32.gmra.mxu0 %v80
    %v317 = vpop.f32.mrf.mxu0
    %v318 = vadd.f32 %v214, %v317
    %319 = vdwg.mxu0
    %320 = vmatpush.msra.mxu0 %v208
    %321 = vmatpush.msra.mxu0 %v204
    %322 = vmatpush.msra.mxu0 %v200
    %323 = vmatpush.msra.mxu0 %v196
    %324 = vmatpush.msra.mxu0 %v192
    %325 = vmatpush.msra.mxu0 %v188
    %326 = vmatpush.msra.mxu0 %v184
    %327 = vmatpush.msra.mxu0 %v180
    %328 = vmatpush.msra.mxu0 %v176
    %329 = vmatpush.msra.mxu0 %v172
    %330 = vmatpush.msra.mxu0 %v168
    %331 = vmatpush.msra.mxu0 %v164
    %332 = vmatpush.msra.mxu0 %v160
    %333 = vmatpush.msra.mxu0 %v156
    %334 = vmatpush.msra.mxu0 %v152
    %335 = vmatpush.msra.mxu0 %v148
    %336 = vmatmul.f32.gmra.mxu0 %v81
    %v337 = vpop.f32.mrf.mxu0
    %v338 = vadd.f32 %v318, %v337
    %339 = vdwg.mxu0
    %340 = vmatpush.msra.mxu0 %v145
    %341 = vmatpush.msra.mxu0 %v141
    %342 = vmatpush.msra.mxu0 %v137
    %343 = vmatpush.msra.mxu0 %v133
    %344 = vmatpush.msra.mxu0 %v129
    %345 = vmatpush.msra.mxu0 %v125
    %346 = vmatpush.msra.mxu0 %v121
    %347 = vmatpush.msra.mxu0 %v117
    %348 = vmatpush.msra.mxu0 %v113
    %349 = vmatpush.msra.mxu0 %v109
    %350 = vmatpush.msra.mxu0 %v105
    %351 = vmatpush.msra.mxu0 %v101
    %352 = vmatpush.msra.mxu0 %v97
    %353 = vmatpush.msra.mxu0 %v93
    %354 = vmatpush.msra.mxu0 %v89
    %355 = vmatpush.msra.mxu0 %v85
    %356 = vmatmul.f32.gmra.mxu0 %v80
    %v357 = vpop.f32.mrf.mxu0
    %v358 = vadd.f32 %v215, %v357
    %359 = vdwg.mxu0
    %360 = vmatpush.msra.mxu0 %v209
    %361 = vmatpush.msra.mxu0 %v205
    %362 = vmatpush.msra.mxu0 %v201
    %363 = vmatpush.msra.mxu0 %v197
    %364 = vmatpush.msra.mxu0 %v193
    %365 = vmatpush.msra.mxu0 %v189
    %366 = vmatpush.msra.mxu0 %v185
    %367 = vmatpush.msra.mxu0 %v181
    %368 = vmatpush.msra.mxu0 %v177
    %369 = vmatpush.msra.mxu0 %v173
    %370 = vmatpush.msra.mxu0 %v169
    %371 = vmatpush.msra.mxu0 %v165
    %372 = vmatpush.msra.mxu0 %v161
    %373 = vmatpush.msra.mxu0 %v157
    %374 = vmatpush.msra.mxu0 %v153
    %375 = vmatpush.msra.mxu0 %v149
    %376 = vmatmul.f32.gmra.mxu0 %v81
    %v377 = vpop.f32.mrf.mxu0
    %v378 = vadd.f32 %v358, %v377
    %379 = vdwg.mxu0
    %v380 = vmax.f32 %v258, 0.0
    %v381 = vmax.f32 %v298, 0.0
    %v382 = vmax.f32 %v338, 0.0
    %v383 = vmax.f32 %v378, 0.0
    %v384 = vld [vmem:[#allocation8] sm:$0xff]
    %v385 = vld [vmem:[#allocation8 + $0x8] sm:$0xff]
    %v386 = vld [vmem:[#allocation8 + $0x10] sm:$0xff]
    %v387 = vld [vmem:[#allocation8 + $0x18] sm:$0xff]
    %v388 = vld [vmem:[#allocation8 + $0x20] sm:$0xff]
    %v389 = vld [vmem:[#allocation8 + $0x28] sm:$0xff]
    %v390 = vld [vmem:[#allocation8 + $0x30] sm:$0xff]
    %v391 = vld [vmem:[#allocation8 + $0x38] sm:$0xff]
    %v392 = vld [vmem:[#allocation8 + $0x40] sm:$0xff]
    %v393 = vld [vmem:[#allocation8 + $0x48] sm:$0xff]
    %v394 = vld [vmem:[#allocation8 + $0x50] sm:$0xff]
    %v395 = vld [vmem:[#allocation8 + $0x58] sm:$0xff]
    %v396 = vld [vmem:[#allocation8 + $0x60] sm:$0xff]
    %v397 = vld [vmem:[#allocation8 + $0x68] sm:$0xff]
    %v398 = vld [vmem:[#allocation8 + $0x70] sm:$0xff]
    %v399 = vld [vmem:[#allocation8 + $0x78] sm:$0xff]
    %v400 = vld [vmem:[#allocation8 + $0x80] sm:$0xff]
    %v401 = vld [vmem:[#allocation8 + $0x88] sm:$0xff]
    %v402 = vld [vmem:[#allocation8 + $0x90] sm:$0xff]
    %v403 = vld [vmem:[#allocation8 + $0x98] sm:$0xff]
    %v404 = vld [vmem:[#allocation8 + $0xa0] sm:$0xff]
    %v405 = vld [vmem:[#allocation8 + $0xa8] sm:$0xff]
    %v406 = vld [vmem:[#allocation8 + $0xb0] sm:$0xff]
    %v407 = vld [vmem:[#allocation8 + $0xb8] sm:$0xff]
    %v408 = vld [vmem:[#allocation8 + $0xc0] sm:$0xff]
    %v409 = vld [vmem:[#allocation8 + $0xc8] sm:$0xff]
    %v410 = vld [vmem:[#allocation8 + $0xd0] sm:$0xff]
    %v411 = vld [vmem:[#allocation8 + $0xd8] sm:$0xff]
    %v412 = vld [vmem:[#allocation8 + $0xe0] sm:$0xff]
    %v413 = vld [vmem:[#allocation8 + $0xe8] sm:$0xff]
    %v414 = vld [vmem:[#allocation8 + $0xf0] sm:$0xff]
    %v415 = vld [vmem:[#allocation8 + $0xf8] sm:$0xff]
    %v416 = vld [vmem:[#allocation8 + $0x100] sm:$0xff]
    %v417 = vld [vmem:[#allocation8 + $0x108] sm:$0xff]
    %v418 = vld [vmem:[#allocation8 + $0x110] sm:$0xff]
    %v419 = vld [vmem:[#allocation8 + $0x118] sm:$0xff]
    %v420 = vld [vmem:[#allocation8 + $0x120] sm:$0xff]
    %v421 = vld [vmem:[#allocation8 + $0x128] sm:$0xff]
    %v422 = vld [vmem:[#allocation8 + $0x130] sm:$0xff]
    %v423 = vld [vmem:[#allocation8 + $0x138] sm:$0xff]
    %v424 = vld [vmem:[#allocation8 + $0x140] sm:$0xff]
    %v425 = vld [vmem:[#allocation8 + $0x148] sm:$0xff]
    %v426 = vld [vmem:[#allocation8 + $0x150] sm:$0xff]
    %v427 = vld [vmem:[#allocation8 + $0x158] sm:$0xff]
    %v428 = vld [vmem:[#allocation8 + $0x160] sm:$0xff]
    %v429 = vld [vmem:[#allocation8 + $0x168] sm:$0xff]
    %v430 = vld [vmem:[#allocation8 + $0x170] sm:$0xff]
    %v431 = vld [vmem:[#allocation8 + $0x178] sm:$0xff]
    %v432 = vld [vmem:[#allocation8 + $0x180] sm:$0xff]
    %v433 = vld [vmem:[#allocation8 + $0x188] sm:$0xff]
    %v434 = vld [vmem:[#allocation8 + $0x190] sm:$0xff]
    %v435 = vld [vmem:[#allocation8 + $0x198] sm:$0xff]
    %v436 = vld [vmem:[#allocation8 + $0x1a0] sm:$0xff]
    %v437 = vld [vmem:[#allocation8 + $0x1a8] sm:$0xff]
    %v438 = vld [vmem:[#allocation8 + $0x1b0] sm:$0xff]
    %v439 = vld [vmem:[#allocation8 + $0x1b8] sm:$0xff]
    %v440 = vld [vmem:[#allocation8 + $0x1c0] sm:$0xff]
    %v441 = vld [vmem:[#allocation8 + $0x1c8] sm:$0xff]
    %v442 = vld [vmem:[#allocation8 + $0x1d0] sm:$0xff]
    %v443 = vld [vmem:[#allocation8 + $0x1d8] sm:$0xff]
    %v444 = vld [vmem:[#allocation8 + $0x1e0] sm:$0xff]
    %v445 = vld [vmem:[#allocation8 + $0x1e8] sm:$0xff]
    %v446 = vld [vmem:[#allocation8 + $0x1f0] sm:$0xff]
    %v447 = vld [vmem:[#allocation8 + $0x1f8] sm:$0xff]
    %v448 = vld [vmem:[%s4] sm:$0x1]
    %v450 = vperm.slane %v448, 0
    %452 = vmatpush.msra.mxu0 %v399
    %453 = vmatpush.msra.mxu0 %v398
    %454 = vmatpush.msra.mxu0 %v397
    %455 = vmatpush.msra.mxu0 %v396
    %456 = vmatpush.msra.mxu0 %v395
    %457 = vmatpush.msra.mxu0 %v394
    %458 = vmatpush.msra.mxu0 %v393
    %459 = vmatpush.msra.mxu0 %v392
    %460 = vmatpush.msra.mxu0 %v391
    %461 = vmatpush.msra.mxu0 %v390
    %462 = vmatpush.msra.mxu0 %v389
    %463 = vmatpush.msra.mxu0 %v388
    %464 = vmatpush.msra.mxu0 %v387
    %465 = vmatpush.msra.mxu0 %v386
    %466 = vmatpush.msra.mxu0 %v385
    %467 = vmatpush.msra.mxu0 %v384
    %468 = vmatmul.f32.gmra.mxu0 %v380
    %v469 = vpop.f32.mrf.mxu0
    %v470 = vadd.f32 %v450, %v469
    %471 = vdwg.mxu0
    %472 = vmatpush.msra.mxu0 %v415
    %473 = vmatpush.msra.mxu0 %v414
    %474 = vmatpush.msra.mxu0 %v413
    %475 = vmatpush.msra.mxu0 %v412
    %476 = vmatpush.msra.mxu0 %v411
    %477 = vmatpush.msra.mxu0 %v410
    %478 = vmatpush.msra.mxu0 %v409
    %479 = vmatpush.msra.mxu0 %v408
    %480 = vmatpush.msra.mxu0 %v407
    %481 = vmatpush.msra.mxu0 %v406
    %482 = vmatpush.msra.mxu0 %v405
    %483 = vmatpush.msra.mxu0 %v404
    %484 = vmatpush.msra.mxu0 %v403
    %485 = vmatpush.msra.mxu0 %v402
    %486 = vmatpush.msra.mxu0 %v401
    %487 = vmatpush.msra.mxu0 %v400
    %488 = vmatmul.f32.gmra.mxu0 %v381
    %v489 = vpop.f32.mrf.mxu0
    %v490 = vadd.f32 %v470, %v489
    %491 = vdwg.mxu0
    %492 = vmatpush.msra.mxu0 %v431
    %493 = vmatpush.msra.mxu0 %v430
    %494 = vmatpush.msra.mxu0 %v429
    %495 = vmatpush.msra.mxu0 %v428
    %496 = vmatpush.msra.mxu0 %v427
    %497 = vmatpush.msra.mxu0 %v426
    %498 = vmatpush.msra.mxu0 %v425
    %499 = vmatpush.msra.mxu0 %v424
    %500 = vmatpush.msra.mxu0 %v423
    %501 = vmatpush.msra.mxu0 %v422
    %502 = vmatpush.msra.mxu0 %v421
    %503 = vmatpush.msra.mxu0 %v420
    %504 = vmatpush.msra.mxu0 %v419
    %505 = vmatpush.msra.mxu0 %v418
    %506 = vmatpush.msra.mxu0 %v417
    %507 = vmatpush.msra.mxu0 %v416
    %508 = vmatmul.f32.gmra.mxu0 %v382
    %v509 = vpop.f32.mrf.mxu0
    %v510 = vadd.f32 %v490, %v509
    %511 = vdwg.mxu0
    %512 = vmatpush.msra.mxu0 %v447
    %513 = vmatpush.msra.mxu0 %v446
    %514 = vmatpush.msra.mxu0 %v445
    %515 = vmatpush.msra.mxu0 %v444
    %516 = vmatpush.msra.mxu0 %v443
    %517 = vmatpush.msra.mxu0 %v442
    %518 = vmatpush.msra.mxu0 %v441
    %519 = vmatpush.msra.mxu0 %v440
    %520 = vmatpush.msra.mxu0 %v439
    %521 = vmatpush.msra.mxu0 %v438
    %522 = vmatpush.msra.mxu0 %v437
    %523 = vmatpush.msra.mxu0 %v436
    %524 = vmatpush.msra.mxu0 %v435
    %525 = vmatpush.msra.mxu0 %v434
    %526 = vmatpush.msra.mxu0 %v433
    %527 = vmatpush.msra.mxu0 %v432
    %528 = vmatmul.f32.gmra.mxu0 %v383
    %v529 = vpop.f32.mrf.mxu0
    %v530 = vadd.f32 %v510, %v529
    %531 = vdwg.mxu0
    %v532 = vxor.u32 %v530, 2147483648
    %v533 = vmul.f32 %v532, 1.442695
    %v534 = vpow.pop %v533
    %v535 = vadd.f32 %v534, 1.0
    %v536 = vrcp.pop %v535
    %v537 = vmul.f32 %v535, %v536
    %v538 = vsub.f32 1.0, %v537
    %v539 = vmul.f32 %v536, %v538
    %v540 = vadd.f32 %v536, %v539
    %vm541 = vweird.f32 %v535
    %vm542 = vweird.f32 %v536
    %vm543 = vmor %vm541, %vm542
    %v544 = vsel %vm543, %v536, %v540
    %v545 = vand.u32 2147483647, %v535
    %vm546 = vcmp.eq.f32.partialorder %v545, 8.507059e+37
    %v547 = vand.u32 %v535, 2147483648
    %v548 = vor.u32 1.1754944e-38, %v547
    %v549 = vsel %vm546, %v548, %v544
    %v550 = vmul.f32 1.0, %v549
    %551 = vst [vmem:[#allocation10] sm:$0xff] %v550
    // Predicated region
    $region38: #{tpu_custom_call.1} parent=1 // pred_check
      _
    $region39: #{tpu_custom_call.1} parent=1 // pred_check_branch
      %553 = sbr.rel (0) target = $region41
    $region40: #{tpu_custom_call.1} parent=1 // pred_region
      %555 = vsyncadd [#allocation4], 0
      %s557 = sshll.u32 [#allocation10], 4
      %s558 = int_to_ptr.vmem [resolvable:$true] %s557
      %s559 = sshll.u32 %s5, 4
      %s560 = int_to_ptr.hbm [resolvable:$true] %s559
      %562 = dma.vmem_to_hbm [thread:$0]  %s558, 128, %s560, [#allocation4]
    $region41: #{tpu_custom_call.1} parent=1 // pred_fallthru
      _
    // Predicated region
    $region42: #{tpu_custom_call.1} parent=1 // pred_check
      _
    $region43: #{tpu_custom_call.1} parent=1 // pred_check_branch
      %564 = sbr.rel (0) target = $region45
    $region44: #{tpu_custom_call.1} parent=1 // pred_region
      %566 = dma.done [#allocation4], 128
    $region45: #{tpu_custom_call.1} parent=1 // pred_fallthru
      _
    %567 = vsyncpa [#allocation3], 1
    %568 = vsyncpa [#allocation6], 1
    %569 = vsyncpa [#allocation9], 1
    %570 = vsyncpa [#allocation4], 1

</llo_original>
